<compile_context>
chip_gen: v7x
topology: tpu7x:2x2x1
jax: 0.10.0
libtpu: 0.0.40
codegen_flags: <defaults>
</compile_context>

<pallas_src>
import functools

import jax
import jax.numpy as jnp
from jax.experimental import pallas as pl
from jax.experimental.pallas import tpu as pltpu

EPS = 1e-6

# ~12 MiB of live tile traffic (double-buffered input + output tiles). This
# stays comfortably inside v5e's 16 MiB scoped default (which we raise anyway),
# v6e's 32 MiB default, and well under v7x's 64 MiB physical VMEM per core.
_WORKING_SET_BUDGET_BYTES = 12 * 1024 * 1024
_VMEM_LIMIT_BYTES = 32 * 1024 * 1024  # safe on v5e/v6e (128 MiB) and v7x (64 MiB)
_MAX_ROW_TILE = 1024                  # diminishing returns beyond ~512-1024 rows


def _choose_row_tile(num_rows: int, hidden: int, in_itemsize: int, out_itemsize: int) -> int:
    """Pick the largest sublane-aligned row tile that fits the VMEM budget."""
    budget = _WORKING_SET_BUDGET_BYTES
    try:
        # Trace-time hardware query: shrink the budget on small-VMEM chips (v7x).
        phys_vmem = pltpu.get_tpu_info().vmem_capacity_bytes
        budget = min(budget, phys_vmem // 6)
    except Exception:  # pragma: no cover - fall back to the conservative default
        pass

    # Double-buffered input tile + double-buffered output tile live in VMEM.
    bytes_per_row = 2 * hidden * (in_itemsize + out_itemsize)
    tile = budget // max(bytes_per_row, 1)
    tile = min(tile, _MAX_ROW_TILE)
    # Multiple of 16: full vreg sublane occupancy even for bf16 (16 rows/vreg).
    tile = max(16, (tile // 16) * 16)
    # Never allocate (much) more rows than the array has; keep sublane multiple of 8.
    tile = min(tile, ((num_rows + 7) // 8) * 8)
    return max(tile, 8)


def _layernorm_kernel(alpha_ref, bias_ref, x_ref, o_ref):
    # x_ref: (ROW_TILE, H) tile in VMEM; alpha/bias: (1,) scalars in SMEM.
    x = x_ref[...].astype(jnp.float32)
    n = x.shape[-1]

    # Single pass over the tile: both cross-lane (XLU) reductions are issued
    # off the same loaded data with no dependence between them.
    s1 = jnp.sum(x, axis=-1, keepdims=True)        # sum(x)
    s2 = jnp.sum(x * x, axis=-1, keepdims=True)    # sum(x^2)

    inv_n = 1.0 / n
    mean = s1 * inv_n
    # Unbiased (N-1) variance, matching torch.std's default.
    var = (s2 - s1 * mean) * (1.0 / (n - 1))
    var = jnp.maximum(var, 0.0)                    # guard tiny negative rounding
    std = jnp.sqrt(var)

    # eps is added to std (NOT rsqrt(var + eps)) to match the PyTorch module.
    inv = pl.reciprocal(std + EPS, approx=False)
    # Fold the scalar alpha into the per-row scale: one fewer full-width VPU mul.
    scale = alpha_ref[0] * inv                     # (ROW_TILE, 1)
    out = (x - mean) * scale + bias_ref[0]
    o_ref[...] = out.astype(o_ref.dtype)


@jax.jit
def layer_normalization(x, alpha, bias):
    """x: (..., H). alpha, bias: shape-(1,) parameters (like nn.Parameter(ones(1)))."""
    orig_shape = x.shape
    H = orig_shape[-1]
    assert H >= 2, "hidden dim must be >= 2 (unbiased std divides by N-1)"

    R = 1
    for d in orig_shape[:-1]:
        R *= d
    x2d = x.reshape(R, H)

    row_tile = _choose_row_tile(R, H, x.dtype.itemsize, x.dtype.itemsize)
    grid = (pl.cdiv(R, row_tile),)

    out2d = pl.pallas_call(
        _layernorm_kernel,
        out_shape=jax.ShapeDtypeStruct((R, H), x.dtype),
        grid=grid,
        in_specs=[
            pl.BlockSpec(memory_space=pltpu.SMEM),              # alpha (1,)
            pl.BlockSpec(memory_space=pltpu.SMEM),              # bias  (1,)
            pl.BlockSpec((row_tile, H), lambda i: (i, 0)),      # x tile
        ],
        out_specs=pl.BlockSpec((row_tile, H), lambda i: (i, 0)),
        compiler_params=pltpu.CompilerParams(
            # Row axis is embarrassingly parallel -> lets v7x shard it across
            # both TensorCores; neutral on single-core v5e/v6e.
            dimension_semantics=("parallel",),
            vmem_limit_bytes=_VMEM_LIMIT_BYTES,
        ),
    )(alpha.astype(jnp.float32), bias.astype(jnp.float32), x2d)

    return out2d.reshape(orig_shape)


def _reference(x, alpha, bias):
    # Pure-JAX reference mirroring the PyTorch forward (two-pass, unbiased std).
    x = x.astype(jnp.float32)
    mean = jnp.mean(x, axis=-1, keepdims=True)
    std = jnp.std(x, axis=-1, keepdims=True, ddof=1)
    return alpha[0] * (x - mean) / (std + EPS) + bias[0]


if __name__ == "__main__":
    key = jax.random.PRNGKey(0)
    batch, seq, hidden = 2, 8, 32
    x = jax.random.normal(key, (batch, seq, hidden), dtype=jnp.float32)

    # Deterministic parameter init, matching nn.Parameter(torch.ones(1)) / zeros(1).
    alpha = jnp.ones((1,), dtype=jnp.float32)
    bias = jnp.zeros((1,), dtype=jnp.float32)

    out = layer_normalization(x, alpha, bias)
    out = jax.block_until_ready(out)

    ref = _reference(x, alpha, bias)
    assert out.shape == x.shape
    # Slightly looser atol: the kernel's single-pass sum/sumsq variance reorders
    # the f32 reduction relative to the two-pass reference.
    assert jnp.allclose(out, ref, atol=1e-4, rtol=1e-5), "mismatch vs reference"

    print("KERNEL_OK")
</pallas_src>

<mosaic_0001>
module attributes {stable_mosaic.version = 11 : i64} {
  func.func @_layernorm_kernel(%arg0: i32, %arg1: memref<1xf32, #tpu.memory_space<smem>>, %arg2: memref<1xf32, #tpu.memory_space<smem>>, %arg3: memref<16x32xf32, #tpu.memory_space<vmem>>, %arg4: memref<16x32xf32, #tpu.memory_space<vmem>>) attributes {dimension_semantics = [#tpu.dimension_semantics<parallel>], iteration_bounds = array<i64: 1>, scalar_prefetch = 0 : i64, scratch_operands = 0 : i64, tpu.core_type = #tpu.core_type<tc>, window_params = [{transform_indices = @transform_0, window_bounds = array<i64: 1>}, {transform_indices = @transform_1, window_bounds = array<i64: 1>}, {transform_indices = @transform_2, window_bounds = array<i64: 16, 32>}, {transform_indices = @transform_3, window_bounds = array<i64: 16, 32>}]} {
    %c0 = arith.constant 0 : index
    %c0_0 = arith.constant 0 : index
    %0 = vector.load %arg3[%c0, %c0_0] : memref<16x32xf32, #tpu.memory_space<vmem>>, vector<16x32xf32>
    %cst = arith.constant dense<0.000000e+00> : vector<16xf32>
    %1 = vector.multi_reduction <add>, %0, %cst [1] : vector<16x32xf32> to vector<16xf32>
    %2 = vector.shape_cast %1 : vector<16xf32> to vector<16x1xf32>
    %3 = arith.mulf %0, %0 : vector<16x32xf32>
    %cst_1 = arith.constant dense<0.000000e+00> : vector<16xf32>
    %4 = vector.multi_reduction <add>, %3, %cst_1 [1] : vector<16x32xf32> to vector<16xf32>
    %5 = vector.shape_cast %4 : vector<16xf32> to vector<16x1xf32>
    %cst_2 = arith.constant 3.125000e-02 : f32
    %6 = vector.broadcast %cst_2 : f32 to vector<16x1xf32>
    %7 = arith.mulf %2, %6 : vector<16x1xf32>
    %8 = arith.mulf %2, %7 : vector<16x1xf32>
    %9 = arith.subf %5, %8 : vector<16x1xf32>
    %cst_3 = arith.constant 0.0322580636 : f32
    %10 = vector.broadcast %cst_3 : f32 to vector<16x1xf32>
    %11 = arith.mulf %9, %10 : vector<16x1xf32>
    %cst_4 = arith.constant 0.000000e+00 : f32
    %12 = vector.broadcast %cst_4 : f32 to vector<16x1xf32>
    %13 = arith.maximumf %11, %12 : vector<16x1xf32>
    %14 = math.sqrt %13 : vector<16x1xf32>
    %cst_5 = arith.constant 9.99999997E-7 : f32
    %15 = vector.broadcast %cst_5 : f32 to vector<16x1xf32>
    %16 = arith.addf %14, %15 : vector<16x1xf32>
    %17 = tpu.reciprocal %16 : vector<16x1xf32> -> vector<16x1xf32>
    %c0_6 = arith.constant 0 : index
    %18 = memref.load %arg1[%c0_6] : memref<1xf32, #tpu.memory_space<smem>>
    %19 = vector.broadcast %18 : f32 to vector<16x1xf32>
    %20 = arith.mulf %19, %17 : vector<16x1xf32>
    %21 = vector.broadcast %7 : vector<16x1xf32> to vector<16x32xf32>
    %22 = arith.subf %0, %21 : vector<16x32xf32>
    %23 = vector.broadcast %20 : vector<16x1xf32> to vector<16x32xf32>
    %24 = arith.mulf %22, %23 : vector<16x32xf32>
    %c0_7 = arith.constant 0 : index
    %25 = memref.load %arg2[%c0_7] : memref<1xf32, #tpu.memory_space<smem>>
    %26 = vector.broadcast %25 : f32 to vector<16x32xf32>
    %27 = arith.addf %24, %26 : vector<16x32xf32>
    %c0_8 = arith.constant 0 : index
    %c0_9 = arith.constant 0 : index
    %28 = vector.load %arg4[%c0_8, %c0_9] : memref<16x32xf32, #tpu.memory_space<vmem>>, vector<16x32xf32>
    tpu.vector_store %arg4[%c0_8, %c0_9], %27 {strides = array<i32>} : memref<16x32xf32, #tpu.memory_space<vmem>>, vector<16x32xf32>,
    return
  }
  func.func @transform_0(%arg0: i32) -> i32 {
    %c0_i32 = arith.constant 0 : i32
    %c0_i32_0 = arith.constant 0 : i32
    return %c0_i32 : i32
  }
  func.func @transform_1(%arg0: i32) -> i32 {
    %c0_i32 = arith.constant 0 : i32
    %c0_i32_0 = arith.constant 0 : i32
    return %c0_i32 : i32
  }
  func.func @transform_2(%arg0: i32) -> (i32, i32) {
    %c0_i32 = arith.constant 0 : i32
    %c0_i32_0 = arith.constant 0 : i32
    return %arg0, %c0_i32 : i32, i32
  }
  func.func @transform_3(%arg0: i32) -> (i32, i32) {
    %c0_i32 = arith.constant 0 : i32
    %c0_i32_0 = arith.constant 0 : i32
    return %arg0, %c0_i32 : i32, i32
  }
}

</mosaic_0001>

<llo_original>
// kernel: layer_normalization.1
$region0: #{layer_normalization.1}
  #allocation0 [shape = 'u32[]', space=smem, size = 0x4, offset = 0x4, fixed_abs, tag = 'smem constant byte address 0x4 - core index']
  #allocation1 [shape = 'u32[144,128]{1,0:T(1,128)}', space=vmem, size = 0x12000, scoped, tag = 'internal scratch']
  #allocation2 [shape = 'f32[1]{0:T(128)S(6)}', space=smem, size = 0x200, scoped, tag = 'scoped memory for layer_normalization.1']
  #allocation3 [shape = 'f32[1]{0:T(128)S(6)}', space=smem, size = 0x200, scoped, tag = 'scoped memory for layer_normalization.1']
  %s0 = inlined_call_operand.<no memory space> [shape: f32[1], index: 0, kind: input, shape index: {}]
  %s1 = inlined_call_operand.<no memory space> [shape: f32[1], index: 1, kind: input, shape index: {}]
  %s2 = inlined_call_operand.hbm [shape: f32[16,32], index: 2, kind: input, shape index: {}]
  %s3 = inlined_call_operand.hbm [shape: f32[16,32], index: 3, kind: output, shape index: {}]
  %s4 = sld [smem:[#allocation0]]
  $region26: #{layer_normalization.1} parent=0
    _
  %s6 = ssub.s32 1, %s4
  %s7 = scalar_select 0, %s6, %s4
  %8 = sst [smem:[#allocation2]] %s0
  %9 = sst [smem:[#allocation3]] %s1
  $region1: #{layer_normalization.1} parent=0
    #allocation4 [shape = 'u8[8192]{0}', space=vmem, size = 0x2000, scoped, tag = 'input window, operand 2, single buffered']
    #allocation5 [shape = 's32[1]{0}', space=sflag, size = 0x4, scoped, tag = 'scoped memory for layer_normalization.1']
    #allocation6 [shape = 's32[1]{0}', space=sflag, size = 0x4, scoped, tag = 'scoped memory for layer_normalization.1']
    #allocation7 [shape = 'u8[8192]{0}', space=vmem, size = 0x2000, scoped, tag = 'output window, operand 0, single buffered']
    %10 = vsyncpa [#allocation5], 0
    %11 = vsyncpa [#allocation6], 0
    // Predicated region
    $region2: #{layer_normalization.1} parent=1 // pred_check
      _
    $region3: #{layer_normalization.1} parent=1 // pred_check_branch
      %13 = sbr.rel (0) target = $region5
    $region4: #{layer_normalization.1} parent=1 // pred_region
      _
    $region5: #{layer_normalization.1} parent=1 // pred_fallthru
      _
    // Predicated region
    $region6: #{layer_normalization.1} parent=1 // pred_check
      _
    $region7: #{layer_normalization.1} parent=1 // pred_check_branch
      %15 = sbr.rel (0) target = $region9
    $region8: #{layer_normalization.1} parent=1 // pred_region
      _
    $region9: #{layer_normalization.1} parent=1 // pred_fallthru
      _
    // Predicated region
    $region10: #{layer_normalization.1} parent=1 // pred_check
      _
    $region11: #{layer_normalization.1} parent=1 // pred_check_branch
      %17 = sbr.rel (0) target = $region13
    $region12: #{layer_normalization.1} parent=1 // pred_region
      %s19 = ssub.s32 256, 256
      %20 = vsyncadd [#allocation5], %s19
      %s21 = sshll.u32 [#allocation4], 4
      %s22 = int_to_ptr.vmem [resolvable:$true] %s21
      %27 = dma.hbm_to_vmem [thread:$0]  %s2, 256, %s22, [#allocation5], 128, 128, 8
    $region13: #{layer_normalization.1} parent=1 // pred_fallthru
      _
    // Predicated region
    $region14: #{layer_normalization.1} parent=1 // pred_check
      _
    $region15: #{layer_normalization.1} parent=1 // pred_check_branch
      %29 = sbr.rel (0) target = $region17
    $region16: #{layer_normalization.1} parent=1 // pred_region
      %30 = dma.done [#allocation5], 256
    $region17: #{layer_normalization.1} parent=1 // pred_fallthru
      _
    %v31 = vld [vmem:[#allocation4] sm:$0xff]
    %v32 = vld [vmem:[#allocation4 + $0x8] sm:$0xff]
    %vm33 = vcmask 261120
    %v34 = vsel %vm33, %v31, 0.0
    %35 = vadd.xlane.f32.xlu0 %v34
    %v36 = vpop.xlane.xlu0 %35
    %v37 = vsel %vm33, %v32, 0.0
    %38 = vadd.xlane.f32.xlu0 %v37
    %v39 = vpop.xlane.xlu0 %38
    %v40 = vmul.f32 %v31, %v31
    %v41 = vmul.f32 %v32, %v32
    %v42 = vsel %vm33, %v40, 0.0
    %43 = vadd.xlane.f32.xlu0 %v42
    %v44 = vpop.xlane.xlu0 %43
    %v45 = vsel %vm33, %v41, 0.0
    %46 = vadd.xlane.f32.xlu0 %v45
    %v47 = vpop.xlane.xlu0 %46
    %v48 = vmul.f32 %v36, 0.03125
    %v49 = vmul.f32 %v39, 0.03125
    %v50 = vmul.f32 %v36, %v48
    %v51 = vmul.f32 %v39, %v49
    %v52 = vsub.f32 %v44, %v50
    %v53 = vsub.f32 %v47, %v51
    %v54 = vmul.f32 %v52, 0.032258064
    %v55 = vmul.f32 %v53, 0.032258064
    %v56 = vmax.f32 %v54, 0.0
    %v57 = vmax.f32 %v55, 0.0
    %v58 = vrsqrt.pop %v56
    %v59 = vmul.f32 %v56, %v58
    %vm60 = vcmp.eq.f32.partialorder %v56, inf
    %v61 = vsel %vm60, %v56, %v59
    %vm62 = vcmp.eq.f32.partialorder %v56, 0.0
    %v63 = vand.u32 %v56, 2147483648
    %v64 = vsel %vm62, %v63, %v61
    %v65 = vrsqrt.pop %v57
    %v66 = vmul.f32 %v57, %v65
    %vm67 = vcmp.eq.f32.partialorder %v57, inf
    %v68 = vsel %vm67, %v57, %v66
    %vm69 = vcmp.eq.f32.partialorder %v57, 0.0
    %v70 = vand.u32 %v57, 2147483648
    %v71 = vsel %vm69, %v70, %v68
    %v72 = vadd.f32 %v64, 1e-06
    %v73 = vadd.f32 %v71, 1e-06
    %v74 = vrcp.pop %v72
    %v75 = vrcp.pop %v73
    %s76 = sld [smem:[#allocation2]]
    %v77 = vstv %s76
    %v78 = vmul.f32 %v77, %v74
    %v79 = vmul.f32 %v77, %v75
    %v80 = vsub.f32 %v31, %v48
    %v81 = vsub.f32 %v32, %v49
    %v82 = vmul.f32 %v80, %v78
    %v83 = vmul.f32 %v81, %v79
    %s84 = sld [smem:[#allocation3]]
    %v85 = vstv %s84
    %v86 = vadd.f32 %v82, %v85
    %v87 = vadd.f32 %v83, %v85
    %88 = vst.msk [vmem:[#allocation7] sm:$0xff] %vm33, %v86
    %89 = vst.msk [vmem:[#allocation7 + $0x8] sm:$0xff] %vm33, %v87
    // Predicated region
    $region18: #{layer_normalization.1} parent=1 // pred_check
      _
    $region19: #{layer_normalization.1} parent=1 // pred_check_branch
      %91 = sbr.rel (0) target = $region21
    $region20: #{layer_normalization.1} parent=1 // pred_region
      %s93 = ssub.s32 256, 256
      %94 = vsyncadd [#allocation6], %s93
      %s95 = sshll.u32 [#allocation7], 4
      %s96 = int_to_ptr.vmem [resolvable:$true] %s95
      %101 = dma.vmem_to_hbm [thread:$0]  %s96, 256, %s3, [#allocation6], 128, 128, 8
    $region21: #{layer_normalization.1} parent=1 // pred_fallthru
      _
    // Predicated region
    $region22: #{layer_normalization.1} parent=1 // pred_check
      _
    $region23: #{layer_normalization.1} parent=1 // pred_check_branch
      %103 = sbr.rel (0) target = $region25
    $region24: #{layer_normalization.1} parent=1 // pred_region
      %104 = dma.done [#allocation6], 256
    $region25: #{layer_normalization.1} parent=1 // pred_fallthru
      _
    %105 = vsyncpa [#allocation5], 1
    %106 = vsyncpa [#allocation6], 1

</llo_original>
